<compile_context>
chip_gen: v7x
topology: tpu7x:2x2x1
jax: 0.10.0
libtpu: 0.0.40
codegen_flags: <defaults>
</compile_context>

<pallas_src>
import functools

import jax
import jax.numpy as jnp
from jax.experimental import pallas as pl
from jax.experimental.pallas import tpu as pltpu


def _round_up(x, m):
    return ((x + m - 1) // m) * m


def _make_mlp_kernel(num_layers, compute_dtype):
    """Kernel for an MLP with `num_layers` Linear layers.

    Ref order: x, (w0, b0), (w1, b1), ..., out
      x    : (TILE_B, in_dim)    fp32 (downcast to compute_dtype inside)
      wK   : (in_K, out_K)       compute_dtype
      bK   : (1, out_K)          fp32
      out  : (TILE_B, out_dim)   out dtype
    """

    def kernel(*refs):
        x_ref = refs[0]
        o_ref = refs[-1]
        p_refs = refs[1:-1]

        # Downcast the streamed fp32 rows *inside* the kernel: HBM only ever
        # sees the original fp32 x (no wrapper-side bf16 copy / extra pass).
        h = x_ref[...].astype(compute_dtype)
        for li in range(num_layers):
            w = p_refs[2 * li][...]
            b = p_refs[2 * li + 1][...]
            # MXU matmul with fp32 accumulation; bias add stays in fp32.
            acc = jnp.dot(h, w, preferred_element_type=jnp.float32) + b
            if li < num_layers - 1:
                # tanh on the low-precision value: half the EUP pushes on
                # v6e/v7x (bf16 EUP); on v5e Mosaic extends to f32 anyway.
                h = jnp.tanh(acc.astype(compute_dtype))
            else:
                h = acc
        # TODO(synk): out_dim (= trial_len*num_bases = 48 here) is < 128 lanes
        # so this store is lane-masked; a lane-dense (tile*48/128, 128) slab
        # would be faster, but the required (T,48)->(T*48/128,128) reshape is
        # not a Mosaic-supported shape_cast.  The HBM writeback itself is
        # still fully contiguous since the block spans all out_dim columns.
        o_ref[...] = h.astype(o_ref.dtype)

    return kernel


def _pad_hidden(params, multiple=16):
    """Zero-pad hidden widths to a multiple of `multiple` (16 keeps bf16
    sublane packing clean on all generations).

    Exact: padded hidden units receive 0 pre-activation (zero weight cols,
    zero bias), tanh(0) = 0, and the next layer's padded rows are zero.
    """
    out = []
    n = len(params)
    for i, (w, b) in enumerate(params):
        d_in, d_out = w.shape
        pad_in = 0 if i == 0 else _round_up(d_in, multiple) - d_in
        pad_out = 0 if i == n - 1 else _round_up(d_out, multiple) - d_out
        if pad_in or pad_out:
            w = jnp.pad(w, ((0, pad_in), (0, pad_out)))
            b = jnp.pad(b, ((0, pad_out),))
        out.append((w, b))
    return out


def _choose_tiling(B, per_row_bytes, vmem_budget_bytes, target_steps, quantum=16):
    """Pick (tile_rows, padded_B).

    Goals (performance review):
      * tile divides B whenever possible -> no jnp.pad(x) pass and no out[:B]
        slice pass (each is a full extra HBM read+write on a mem-bound kernel);
      * >= `target_steps` grid steps when B allows -> megacore sharding on
        v7x's two TensorCores + DMA/compute pipelining;
      * per-step VMEM (double-buffered x/out blocks + intermediates) stays
        inside `vmem_budget_bytes` so the kernel fits v7x's 64 MiB VMEM while
        still using large tiles on v5e/v6e (amortizes ~0.35 us/step overhead).
    """
    max_tile = max(quantum,
                   (vmem_budget_bytes // per_row_bytes) // quantum * quantum)

    if B % quantum == 0:
        units = B // quantum
        cap = max(1, min(max_tile // quantum, units // min(target_steps, units)))
        d = cap
        while units % d:
            d -= 1
        return d * quantum, B                      # exact split, no padding

    if B <= min(max_tile, 4096):
        # Small / oddly-sized batch: one block covering the whole array
        # (block_shape == array shape, so no sublane-divisibility constraint,
        # no padding pass, no output slice pass).
        return B, B

    # Fallback: pad the batch (costs one extra pass over x and out).
    tile = max(quantum, min(max_tile, _round_up(-(-B // target_steps), quantum)))
    return tile, _round_up(B, tile)


@functools.partial(
    jax.jit,
    static_argnames=("trial_len", "num_bases", "compute_dtype", "out_dtype",
                     "vmem_budget_bytes", "target_steps"),
)
def bases_forward(stiminds, params, *, trial_len, num_bases,
                  compute_dtype=jnp.bfloat16, out_dtype=jnp.float32,
                  vmem_budget_bytes=40 * 1024 * 1024, target_steps=4):
    """JAX wrapper reproducing Bases.forward.

    stiminds: (batch, trial_len, stimdim) float32
    params:   list of (W, b) with W shaped (in_features, out_features)
    returns:  (batch, trial_len, num_bases) out_dtype (fp32 by default; set
              out_dtype=jnp.bfloat16 to halve output HBM bytes if downstream
              tolerates it)
    """
    B = stiminds.shape[0]
    x = stiminds.reshape(B, -1)          # flatten(start_dim=1); keep fp32
    in_dim = x.shape[1]
    out_dim = trial_len * num_bases

    # Exact zero-padding of hidden widths -> clean bf16 (16,128) tiling.
    params = _pad_hidden(params, multiple=16)
    if len(params) > 1:
        ldim_pad = max(w.shape[1] for (w, _) in params[:-1])
    else:
        ldim_pad = in_dim

    x_itemsize = jnp.dtype(x.dtype).itemsize
    c_itemsize = jnp.dtype(compute_dtype).itemsize
    o_itemsize = jnp.dtype(out_dtype).itemsize
    # Per-row VMEM estimate: double-buffered x and out blocks, the in-kernel
    # low-precision copy of x, plus a generous allowance for hidden
    # activations / fp32 accumulators.
    per_row = (2 * in_dim * x_itemsize
               + in_dim * c_itemsize
               + 2 * out_dim * o_itemsize
               + 6 * max(ldim_pad, out_dim) * 4)
    weight_bytes = sum(w.size * c_itemsize + b.size * 4 for (w, b) in params)
    budget = max(per_row, vmem_budget_bytes - 2 * weight_bytes)

    tile, b_pad = _choose_tiling(B, per_row, budget, target_steps)
    if b_pad != B:
        x = jnp.pad(x, ((0, b_pad - B), (0, 0)))
    grid = (b_pad // tile,)

    flat_args = [x]
    in_specs = [pl.BlockSpec((tile, in_dim), lambda i: (i, 0))]
    for (w, b) in params:
        w = w.astype(compute_dtype)
        b2 = b.reshape(1, -1).astype(jnp.float32)
        flat_args.append(w)
        flat_args.append(b2)
        # Constant block index -> weights/biases DMA'd once, VMEM-resident
        # across all grid steps.
        in_specs.append(pl.BlockSpec(w.shape, lambda i: (0, 0)))
        in_specs.append(pl.BlockSpec(b2.shape, lambda i: (0, 0)))

    # Scoped VMEM: enough for the double-buffered blocks + weights with
    # headroom, capped at 56 MiB so it is valid on v7x (64 MiB physical) and
    # comfortably raises the small default scoped limits on v5e/v6e.
    vmem_limit = int(min(56 * 1024 * 1024,
                         max(32 * 1024 * 1024,
                             1.25 * (tile * per_row + 2 * weight_bytes))))

    kernel = _make_mlp_kernel(len(params), compute_dtype)

    out = pl.pallas_call(
        kernel,
        out_shape=jax.ShapeDtypeStruct((b_pad, out_dim), out_dtype),
        grid=grid,
        in_specs=in_specs,
        out_specs=pl.BlockSpec((tile, out_dim), lambda i: (i, 0)),
        compiler_params=pltpu.CompilerParams(
            dimension_semantics=("parallel",),
            vmem_limit_bytes=vmem_limit,
        ),
    )(*flat_args)

    if b_pad != B:
        out = out[:B]
    # unflatten(dim=1, sizes=(trial_len, num_bases)) -- row-major, free.
    return out.reshape(B, trial_len, num_bases)


def init_params(key, stimdim, num_bases, trial_len, latent_dim=20, basis_depth=2):
    """Deterministic synthetic parameters (PyTorch-Linear shapes, stored as
    (in_features, out_features) for the x @ W convention)."""
    in_dim = stimdim * trial_len
    ldim = latent_dim
    dims = [(in_dim, ldim)]
    for _ in range(basis_depth):
        dims.append((ldim, ldim))
    dims.append((ldim, trial_len * num_bases))

    params = []
    for (d_in, d_out) in dims:
        key, kw, kb = jax.random.split(key, 3)
        bound = 1.0 / jnp.sqrt(d_in)  # mimic nn.Linear default init range
        w = jax.random.uniform(kw, (d_in, d_out), jnp.float32, -bound, bound)
        b = jax.random.uniform(kb, (d_out,), jnp.float32, -bound, bound)
        params.append((w, b))
    return params


def bases_forward_ref(stiminds, params, *, trial_len, num_bases):
    """Pure-JAX fp32 reference for correctness checking."""
    B = stiminds.shape[0]
    h = stiminds.reshape(B, -1)
    for i, (w, b) in enumerate(params):
        h = h @ w + b
        if i < len(params) - 1:
            h = jnp.tanh(h)
    return h.reshape(B, trial_len, num_bases)


# TODO(synk): get_reg_weights (weight-norm regularizer) is not part of forward
# and is left to plain JAX (jnp.linalg.norm over the weight list).

if __name__ == "__main__":
    # Small shapes consistent with the module signature.
    batch = 2
    stimdim = 4
    trial_len = 8
    num_bases = 6
    latent_dim = 20      # PyTorch default; exercises the hidden-width padding
    basis_depth = 2

    key = jax.random.PRNGKey(0)
    key, kx = jax.random.split(key)
    stiminds = jax.random.normal(kx, (batch, trial_len, stimdim), jnp.float32)

    params = init_params(key, stimdim, num_bases, trial_len,
                         latent_dim=latent_dim, basis_depth=basis_depth)

    out = bases_forward(stiminds, params, trial_len=trial_len, num_bases=num_bases)
    out = jax.block_until_ready(out)

    ref = bases_forward_ref(stiminds, params, trial_len=trial_len, num_bases=num_bases)
    assert out.shape == (batch, trial_len, num_bases), out.shape
    # bf16 weight/activation streams -> loosen tolerance vs fp32 reference.
    # (Error grows roughly with sqrt(in_dim); 2e-2 is ample for in_dim=32,
    # rescale/validate for much larger trial_len*stimdim.)
    assert jnp.allclose(out, ref, atol=2e-2, rtol=2e-2), (
        "mismatch vs reference; max abs err = "
        f"{float(jnp.max(jnp.abs(out - ref)))}"
    )

    print("KERNEL_OK")
</pallas_src>

<mosaic_0001>
module attributes {stable_mosaic.version = 11 : i64} {
  func.func @kernel(%arg0: i32, %arg1: memref<2x32xf32, #tpu.memory_space<vmem>>, %arg2: memref<32x32xbf16, #tpu.memory_space<vmem>>, %arg3: memref<1x32xf32, #tpu.memory_space<vmem>>, %arg4: memref<32x32xbf16, #tpu.memory_space<vmem>>, %arg5: memref<1x32xf32, #tpu.memory_space<vmem>>, %arg6: memref<32x32xbf16, #tpu.memory_space<vmem>>, %arg7: memref<1x32xf32, #tpu.memory_space<vmem>>, %arg8: memref<32x48xbf16, #tpu.memory_space<vmem>>, %arg9: memref<1x48xf32, #tpu.memory_space<vmem>>, %arg10: memref<2x48xf32, #tpu.memory_space<vmem>>) attributes {dimension_semantics = [#tpu.dimension_semantics<parallel>], iteration_bounds = array<i64: 1>, scalar_prefetch = 0 : i64, scratch_operands = 0 : i64, tpu.core_type = #tpu.core_type<tc>, window_params = [{transform_indices = @transform_0, window_bounds = array<i64: 2, 32>}, {pipeline_mode = #tpu.pipeline_mode<synchronous>, transform_indices = @transform_1, window_bounds = array<i64: 32, 32>}, {pipeline_mode = #tpu.pipeline_mode<synchronous>, transform_indices = @transform_2, window_bounds = array<i64: 1, 32>}, {pipeline_mode = #tpu.pipeline_mode<synchronous>, transform_indices = @transform_3, window_bounds = array<i64: 32, 32>}, {pipeline_mode = #tpu.pipeline_mode<synchronous>, transform_indices = @transform_4, window_bounds = array<i64: 1, 32>}, {pipeline_mode = #tpu.pipeline_mode<synchronous>, transform_indices = @transform_5, window_bounds = array<i64: 32, 32>}, {pipeline_mode = #tpu.pipeline_mode<synchronous>, transform_indices = @transform_6, window_bounds = array<i64: 1, 32>}, {pipeline_mode = #tpu.pipeline_mode<synchronous>, transform_indices = @transform_7, window_bounds = array<i64: 32, 48>}, {pipeline_mode = #tpu.pipeline_mode<synchronous>, transform_indices = @transform_8, window_bounds = array<i64: 1, 48>}, {transform_indices = @transform_9, window_bounds = array<i64: 2, 48>}]} {
    %c0 = arith.constant 0 : index
    %c0_0 = arith.constant 0 : index
    %0 = vector.load %arg1[%c0, %c0_0] : memref<2x32xf32, #tpu.memory_space<vmem>>, vector<2x32xf32>
    %1 = arith.truncf %0 : vector<2x32xf32> to vector<2x32xbf16>
    %c0_1 = arith.constant 0 : index
    %c0_2 = arith.constant 0 : index
    %2 = vector.load %arg2[%c0_1, %c0_2] : memref<32x32xbf16, #tpu.memory_space<vmem>>, vector<32x32xbf16>
    %c0_3 = arith.constant 0 : index
    %c0_4 = arith.constant 0 : index
    %3 = vector.load %arg3[%c0_3, %c0_4] : memref<1x32xf32, #tpu.memory_space<vmem>>, vector<1x32xf32>
    %cst = arith.constant dense<0.000000e+00> : vector<2x32xf32>
    %4 = tpu.matmul %1, %2, %cst {dimension_numbers = #tpu.dot_dimension_numbers<[1], [0], [0], [1], [0, 0, 1, 1], [], []>} : vector<2x32xbf16>, vector<32x32xbf16>, vector<2x32xf32> -> vector<2x32xf32>
    %5 = vector.broadcast %3 : vector<1x32xf32> to vector<2x32xf32>
    %6 = arith.addf %4, %5 : vector<2x32xf32>
    %7 = arith.truncf %6 : vector<2x32xf32> to vector<2x32xbf16>
    %8 = math.tanh %7 : vector<2x32xbf16>
    %c0_5 = arith.constant 0 : index
    %c0_6 = arith.constant 0 : index
    %9 = vector.load %arg4[%c0_5, %c0_6] : memref<32x32xbf16, #tpu.memory_space<vmem>>, vector<32x32xbf16>
    %c0_7 = arith.constant 0 : index
    %c0_8 = arith.constant 0 : index
    %10 = vector.load %arg5[%c0_7, %c0_8] : memref<1x32xf32, #tpu.memory_space<vmem>>, vector<1x32xf32>
    %cst_9 = arith.constant dense<0.000000e+00> : vector<2x32xf32>
    %11 = tpu.matmul %8, %9, %cst_9 {dimension_numbers = #tpu.dot_dimension_numbers<[1], [0], [0], [1], [0, 0, 1, 1], [], []>} : vector<2x32xbf16>, vector<32x32xbf16>, vector<2x32xf32> -> vector<2x32xf32>
    %12 = vector.broadcast %10 : vector<1x32xf32> to vector<2x32xf32>
    %13 = arith.addf %11, %12 : vector<2x32xf32>
    %14 = arith.truncf %13 : vector<2x32xf32> to vector<2x32xbf16>
    %15 = math.tanh %14 : vector<2x32xbf16>
    %c0_10 = arith.constant 0 : index
    %c0_11 = arith.constant 0 : index
    %16 = vector.load %arg6[%c0_10, %c0_11] : memref<32x32xbf16, #tpu.memory_space<vmem>>, vector<32x32xbf16>
    %c0_12 = arith.constant 0 : index
    %c0_13 = arith.constant 0 : index
    %17 = vector.load %arg7[%c0_12, %c0_13] : memref<1x32xf32, #tpu.memory_space<vmem>>, vector<1x32xf32>
    %cst_14 = arith.constant dense<0.000000e+00> : vector<2x32xf32>
    %18 = tpu.matmul %15, %16, %cst_14 {dimension_numbers = #tpu.dot_dimension_numbers<[1], [0], [0], [1], [0, 0, 1, 1], [], []>} : vector<2x32xbf16>, vector<32x32xbf16>, vector<2x32xf32> -> vector<2x32xf32>
    %19 = vector.broadcast %17 : vector<1x32xf32> to vector<2x32xf32>
    %20 = arith.addf %18, %19 : vector<2x32xf32>
    %21 = arith.truncf %20 : vector<2x32xf32> to vector<2x32xbf16>
    %22 = math.tanh %21 : vector<2x32xbf16>
    %c0_15 = arith.constant 0 : index
    %c0_16 = arith.constant 0 : index
    %23 = vector.load %arg8[%c0_15, %c0_16] : memref<32x48xbf16, #tpu.memory_space<vmem>>, vector<32x48xbf16>
    %c0_17 = arith.constant 0 : index
    %c0_18 = arith.constant 0 : index
    %24 = vector.load %arg9[%c0_17, %c0_18] : memref<1x48xf32, #tpu.memory_space<vmem>>, vector<1x48xf32>
    %cst_19 = arith.constant dense<0.000000e+00> : vector<2x48xf32>
    %25 = tpu.matmul %22, %23, %cst_19 {dimension_numbers = #tpu.dot_dimension_numbers<[1], [0], [0], [1], [0, 0, 1, 1], [], []>} : vector<2x32xbf16>, vector<32x48xbf16>, vector<2x48xf32> -> vector<2x48xf32>
    %26 = vector.broadcast %24 : vector<1x48xf32> to vector<2x48xf32>
    %27 = arith.addf %25, %26 : vector<2x48xf32>
    %c0_20 = arith.constant 0 : index
    %c0_21 = arith.constant 0 : index
    %28 = vector.load %arg10[%c0_20, %c0_21] : memref<2x48xf32, #tpu.memory_space<vmem>>, vector<2x48xf32>
    tpu.vector_store %arg10[%c0_20, %c0_21], %27 {strides = array<i32>} : memref<2x48xf32, #tpu.memory_space<vmem>>, vector<2x48xf32>,
    return
  }
  func.func @transform_0(%arg0: i32) -> (i32, i32) {
    %c0_i32 = arith.constant 0 : i32
    %c0_i32_0 = arith.constant 0 : i32
    return %arg0, %c0_i32 : i32, i32
  }
  func.func @transform_1(%arg0: i32) -> (i32, i32) {
    %c0_i32 = arith.constant 0 : i32
    %c0_i32_0 = arith.constant 0 : i32
    %c0_i32_1 = arith.constant 0 : i32
    return %c0_i32, %c0_i32_0 : i32, i32
  }
  func.func @transform_2(%arg0: i32) -> (i32, i32) {
    %c0_i32 = arith.constant 0 : i32
    %c0_i32_0 = arith.constant 0 : i32
    %c0_i32_1 = arith.constant 0 : i32
    return %c0_i32, %c0_i32_0 : i32, i32
  }
  func.func @transform_3(%arg0: i32) -> (i32, i32) {
    %c0_i32 = arith.constant 0 : i32
    %c0_i32_0 = arith.constant 0 : i32
    %c0_i32_1 = arith.constant 0 : i32
    return %c0_i32, %c0_i32_0 : i32, i32
  }
  func.func @transform_4(%arg0: i32) -> (i32, i32) {
    %c0_i32 = arith.constant 0 : i32
    %c0_i32_0 = arith.constant 0 : i32
    %c0_i32_1 = arith.constant 0 : i32
    return %c0_i32, %c0_i32_0 : i32, i32
  }
  func.func @transform_5(%arg0: i32) -> (i32, i32) {
    %c0_i32 = arith.constant 0 : i32
    %c0_i32_0 = arith.constant 0 : i32
    %c0_i32_1 = arith.constant 0 : i32
    return %c0_i32, %c0_i32_0 : i32, i32
  }
  func.func @transform_6(%arg0: i32) -> (i32, i32) {
    %c0_i32 = arith.constant 0 : i32
    %c0_i32_0 = arith.constant 0 : i32
    %c0_i32_1 = arith.constant 0 : i32
    return %c0_i32, %c0_i32_0 : i32, i32
  }
  func.func @transform_7(%arg0: i32) -> (i32, i32) {
    %c0_i32 = arith.constant 0 : i32
    %c0_i32_0 = arith.constant 0 : i32
    %c0_i32_1 = arith.constant 0 : i32
    return %c0_i32, %c0_i32_0 : i32, i32
  }
  func.func @transform_8(%arg0: i32) -> (i32, i32) {
    %c0_i32 = arith.constant 0 : i32
    %c0_i32_0 = arith.constant 0 : i32
    %c0_i32_1 = arith.constant 0 : i32
    return %c0_i32, %c0_i32_0 : i32, i32
  }
  func.func @transform_9(%arg0: i32) -> (i32, i32) {
    %c0_i32 = arith.constant 0 : i32
    %c0_i32_0 = arith.constant 0 : i32
    return %arg0, %c0_i32 : i32, i32
  }
}

</mosaic_0001>

<llo_original>
// kernel: bases_forward.1
$region0: #{bases_forward.1}
  #allocation0 [shape = 'u32[]', space=smem, size = 0x4, offset = 0x4, fixed_abs, tag = 'smem constant byte address 0x4 - core index']
  #allocation1 [shape = 'u32[144,128]{1,0:T(1,128)}', space=vmem, size = 0x12000, scoped, tag = 'internal scratch']
  %s0 = inlined_call_operand.vmem [shape: f32[2,32], index: 0, kind: input, shape index: {}]
  %s1 = inlined_call_operand.vmem [shape: bf16[32,32], index: 1, kind: input, shape index: {}]
  %s2 = inlined_call_operand.vmem [shape: f32[1,32], index: 2, kind: input, shape index: {}]
  %s3 = inlined_call_operand.vmem [shape: bf16[32,32], index: 3, kind: input, shape index: {}]
  %s4 = inlined_call_operand.vmem [shape: f32[1,32], index: 4, kind: input, shape index: {}]
  %s5 = inlined_call_operand.vmem [shape: bf16[32,32], index: 5, kind: input, shape index: {}]
  %s6 = inlined_call_operand.vmem [shape: f32[1,32], index: 6, kind: input, shape index: {}]
  %s7 = inlined_call_operand.vmem [shape: bf16[32,48], index: 7, kind: input, shape index: {}]
  %s8 = inlined_call_operand.vmem [shape: f32[1,48], index: 8, kind: input, shape index: {}]
  %s9 = inlined_call_operand.vmem [shape: f32[2,48], index: 9, kind: output, shape index: {}]
  %s10 = sld [smem:[#allocation0]]
  $region46: #{bases_forward.1} parent=0
    _
  %s12 = ssub.s32 1, %s10
  %s13 = scalar_select 0, %s12, %s10
  // Predicated region
  $region2: #{bases_forward.1} parent=0 // pred_check
    _
  $region3: #{bases_forward.1} parent=0 // pred_check_branch
    %15 = sbr.rel (0) target = $region5
  $region4: #{bases_forward.1} parent=0 // pred_region
    _
  $region5: #{bases_forward.1} parent=0 // pred_fallthru
    _
  // Predicated region
  $region6: #{bases_forward.1} parent=0 // pred_check
    _
  $region7: #{bases_forward.1} parent=0 // pred_check_branch
    %17 = sbr.rel (0) target = $region9
  $region8: #{bases_forward.1} parent=0 // pred_region
    _
  $region9: #{bases_forward.1} parent=0 // pred_fallthru
    _
  // Predicated region
  $region10: #{bases_forward.1} parent=0 // pred_check
    _
  $region11: #{bases_forward.1} parent=0 // pred_check_branch
    %19 = sbr.rel (0) target = $region13
  $region12: #{bases_forward.1} parent=0 // pred_region
    _
  $region13: #{bases_forward.1} parent=0 // pred_fallthru
    _
  // Predicated region
  $region14: #{bases_forward.1} parent=0 // pred_check
    _
  $region15: #{bases_forward.1} parent=0 // pred_check_branch
    %21 = sbr.rel (0) target = $region17
  $region16: #{bases_forward.1} parent=0 // pred_region
    _
  $region17: #{bases_forward.1} parent=0 // pred_fallthru
    _
  // Predicated region
  $region18: #{bases_forward.1} parent=0 // pred_check
    _
  $region19: #{bases_forward.1} parent=0 // pred_check_branch
    %23 = sbr.rel (0) target = $region21
  $region20: #{bases_forward.1} parent=0 // pred_region
    _
  $region21: #{bases_forward.1} parent=0 // pred_fallthru
    _
  // Predicated region
  $region22: #{bases_forward.1} parent=0 // pred_check
    _
  $region23: #{bases_forward.1} parent=0 // pred_check_branch
    %25 = sbr.rel (0) target = $region25
  $region24: #{bases_forward.1} parent=0 // pred_region
    _
  $region25: #{bases_forward.1} parent=0 // pred_fallthru
    _
  // Predicated region
  $region26: #{bases_forward.1} parent=0 // pred_check
    _
  $region27: #{bases_forward.1} parent=0 // pred_check_branch
    %27 = sbr.rel (0) target = $region29
  $region28: #{bases_forward.1} parent=0 // pred_region
    _
  $region29: #{bases_forward.1} parent=0 // pred_fallthru
    _
  // Predicated region
  $region30: #{bases_forward.1} parent=0 // pred_check
    _
  $region31: #{bases_forward.1} parent=0 // pred_check_branch
    %29 = sbr.rel (0) target = $region33
  $region32: #{bases_forward.1} parent=0 // pred_region
    _
  $region33: #{bases_forward.1} parent=0 // pred_fallthru
    _
  // Predicated region
  $region34: #{bases_forward.1} parent=0 // pred_check
    _
  $region35: #{bases_forward.1} parent=0 // pred_check_branch
    %31 = sbr.rel (0) target = $region37
  $region36: #{bases_forward.1} parent=0 // pred_region
    _
  $region37: #{bases_forward.1} parent=0 // pred_fallthru
    _
  %v33 = vld [vmem:[%s0] sm:$0x3]
  %v34 = vpack.c.bf16 %v33, %v33
  %v35 = vld [vmem:[%s1] sm:$0xf]
  %v36 = vld [vmem:[%s1 + $0x4] sm:$0xf]
  %v37 = vld [vmem:[%s1 + $0x8] sm:$0xf]
  %v38 = vld [vmem:[%s1 + $0xc] sm:$0xf]
  %v39 = vld [vmem:[%s2] sm:$0x1]
  %v41 = vlaneseq
  %v42 = vshrl.u32 %v41, 7
  %v43 = vsub.s32 0, %v42
  %v44 = vrot.slane %v39, %v43
  %v50 = vunpack.c.l.b16 %v35
  %v51 = vunpack.c.l.b16 %v36
  %v52 = vunpack.c.l.b16 %v37
  %v53 = vunpack.c.l.b16 %v38
  %v54 = vpack.c.b16 %v51, %v50
  %v55 = vpack.c.b16 %v53, %v52
  %vm58 = vcmask 261120
  %v60 = vsel %vm58, %v34, 0
  %62 = vmatprep.subr.bf16.mxu0 0
  %63 = vmatpush1.bf16.msra.mxu0 %v54
  %64 = vmatprep.subr.bf16.mxu0 0
  %65 = vmatpush1.bf16.msra.mxu0 %v55
  %66 = vmatprep.subr.bf16.mxu0 0
  %67 = vmatpush1.bf16.msra.mxu0 0
  %68 = vmatprep.subr.bf16.mxu0 0
  %69 = vmatpush1.bf16.msra.mxu0 0
  %70 = vmatprep.subr.bf16.mxu0 0
  %71 = vmatpush1.bf16.msra.mxu0 0
  %72 = vmatprep.subr.bf16.mxu0 0
  %73 = vmatpush1.bf16.msra.mxu0 0
  %74 = vmatprep.subr.bf16.mxu0 0
  %75 = vmatpush1.bf16.msra.mxu0 0
  %76 = vmatprep.subr.bf16.mxu0 0
  %77 = vmatpush1.bf16.msra.mxu0 0
  %78 = vmatprep.subr.bf16.mxu0 0
  %79 = vmatpush1.bf16.msra.mxu0 0
  %80 = vmatprep.subr.bf16.mxu0 0
  %81 = vmatpush1.bf16.msra.mxu0 0
  %82 = vmatprep.subr.bf16.mxu0 0
  %83 = vmatpush1.bf16.msra.mxu0 0
  %84 = vmatprep.subr.bf16.mxu0 0
  %85 = vmatpush1.bf16.msra.mxu0 0
  %86 = vmatprep.subr.bf16.mxu0 0
  %87 = vmatpush1.bf16.msra.mxu0 0
  %88 = vmatprep.subr.bf16.mxu0 0
  %89 = vmatpush1.bf16.msra.mxu0 0
  %90 = vmatprep.subr.bf16.mxu0 0
  %91 = vmatpush1.bf16.msra.mxu0 0
  %92 = vmatprep.subr.bf16.mxu0 0
  %93 = vmatpush1.bf16.msra.mxu0 0
  %94 = vmatprep.mubr.bf16.mxu0 0
  %95 = vmatmul.mubr.bf16.gmra.mrb[0].mxu0 %v60
  %v96 = vpop.f32.mrb[0].mxu0
  %v97 = vadd.f32 %v44, %v96
  %v98 = vpop.f32.mrb[0].mxu0
  %v99 = vpop.f32.mrb[0].mxu0
  %v100 = vpop.f32.mrb[0].mxu0
  %101 = vdwg.mxu0
  %v102 = vpack.c.bf16 %v97, %v97
  %v103 = vtanh.bf16.pop %v102
  %v104 = vld [vmem:[%s3] sm:$0xf]
  %v105 = vld [vmem:[%s3 + $0x4] sm:$0xf]
  %v106 = vld [vmem:[%s3 + $0x8] sm:$0xf]
  %v107 = vld [vmem:[%s3 + $0xc] sm:$0xf]
  %v108 = vld [vmem:[%s4] sm:$0x1]
  %v110 = vlaneseq
  %v111 = vshrl.u32 %v110, 7
  %v112 = vsub.s32 0, %v111
  %v113 = vrot.slane %v108, %v112
  %v119 = vunpack.c.l.b16 %v104
  %v120 = vunpack.c.l.b16 %v105
  %v121 = vunpack.c.l.b16 %v106
  %v122 = vunpack.c.l.b16 %v107
  %v123 = vpack.c.b16 %v120, %v119
  %v124 = vpack.c.b16 %v122, %v121
  %v128 = vsel %vm58, %v103, 0
  %130 = vmatprep.subr.bf16.mxu0 0
  %131 = vmatpush1.bf16.msra.mxu0 %v123
  %132 = vmatprep.subr.bf16.mxu0 0
  %133 = vmatpush1.bf16.msra.mxu0 %v124
  %134 = vmatprep.subr.bf16.mxu0 0
  %135 = vmatpush1.bf16.msra.mxu0 0
  %136 = vmatprep.subr.bf16.mxu0 0
  %137 = vmatpush1.bf16.msra.mxu0 0
  %138 = vmatprep.subr.bf16.mxu0 0
  %139 = vmatpush1.bf16.msra.mxu0 0
  %140 = vmatprep.subr.bf16.mxu0 0
  %141 = vmatpush1.bf16.msra.mxu0 0
  %142 = vmatprep.subr.bf16.mxu0 0
  %143 = vmatpush1.bf16.msra.mxu0 0
  %144 = vmatprep.subr.bf16.mxu0 0
  %145 = vmatpush1.bf16.msra.mxu0 0
  %146 = vmatprep.subr.bf16.mxu0 0
  %147 = vmatpush1.bf16.msra.mxu0 0
  %148 = vmatprep.subr.bf16.mxu0 0
  %149 = vmatpush1.bf16.msra.mxu0 0
  %150 = vmatprep.subr.bf16.mxu0 0
  %151 = vmatpush1.bf16.msra.mxu0 0
  %152 = vmatprep.subr.bf16.mxu0 0
  %153 = vmatpush1.bf16.msra.mxu0 0
  %154 = vmatprep.subr.bf16.mxu0 0
  %155 = vmatpush1.bf16.msra.mxu0 0
  %156 = vmatprep.subr.bf16.mxu0 0
  %157 = vmatpush1.bf16.msra.mxu0 0
  %158 = vmatprep.subr.bf16.mxu0 0
  %159 = vmatpush1.bf16.msra.mxu0 0
  %160 = vmatprep.subr.bf16.mxu0 0
  %161 = vmatpush1.bf16.msra.mxu0 0
  %162 = vmatprep.mubr.bf16.mxu0 0
  %163 = vmatmul.mubr.bf16.gmra.mrb[0].mxu0 %v128
  %v164 = vpop.f32.mrb[0].mxu0
  %v165 = vadd.f32 %v113, %v164
  %v166 = vpop.f32.mrb[0].mxu0
  %v167 = vpop.f32.mrb[0].mxu0
  %v168 = vpop.f32.mrb[0].mxu0
  %169 = vdwg.mxu0
  %v170 = vpack.c.bf16 %v165, %v165
  %v171 = vtanh.bf16.pop %v170
  %v172 = vld [vmem:[%s5] sm:$0xf]
  %v173 = vld [vmem:[%s5 + $0x4] sm:$0xf]
  %v174 = vld [vmem:[%s5 + $0x8] sm:$0xf]
  %v175 = vld [vmem:[%s5 + $0xc] sm:$0xf]
  %v176 = vld [vmem:[%s6] sm:$0x1]
  %v178 = vlaneseq
  %v179 = vshrl.u32 %v178, 7
  %v180 = vsub.s32 0, %v179
  %v181 = vrot.slane %v176, %v180
  %v187 = vunpack.c.l.b16 %v172
  %v188 = vunpack.c.l.b16 %v173
  %v189 = vunpack.c.l.b16 %v174
  %v190 = vunpack.c.l.b16 %v175
  %v191 = vpack.c.b16 %v188, %v187
  %v192 = vpack.c.b16 %v190, %v189
  %v196 = vsel %vm58, %v171, 0
  %198 = vmatprep.subr.bf16.mxu0 0
  %199 = vmatpush1.bf16.msra.mxu0 %v191
  %200 = vmatprep.subr.bf16.mxu0 0
  %201 = vmatpush1.bf16.msra.mxu0 %v192
  %202 = vmatprep.subr.bf16.mxu0 0
  %203 = vmatpush1.bf16.msra.mxu0 0
  %204 = vmatprep.subr.bf16.mxu0 0
  %205 = vmatpush1.bf16.msra.mxu0 0
  %206 = vmatprep.subr.bf16.mxu0 0
  %207 = vmatpush1.bf16.msra.mxu0 0
  %208 = vmatprep.subr.bf16.mxu0 0
  %209 = vmatpush1.bf16.msra.mxu0 0
  %210 = vmatprep.subr.bf16.mxu0 0
  %211 = vmatpush1.bf16.msra.mxu0 0
  %212 = vmatprep.subr.bf16.mxu0 0
  %213 = vmatpush1.bf16.msra.mxu0 0
  %214 = vmatprep.subr.bf16.mxu0 0
  %215 = vmatpush1.bf16.msra.mxu0 0
  %216 = vmatprep.subr.bf16.mxu0 0
  %217 = vmatpush1.bf16.msra.mxu0 0
  %218 = vmatprep.subr.bf16.mxu0 0
  %219 = vmatpush1.bf16.msra.mxu0 0
  %220 = vmatprep.subr.bf16.mxu0 0
  %221 = vmatpush1.bf16.msra.mxu0 0
  %222 = vmatprep.subr.bf16.mxu0 0
  %223 = vmatpush1.bf16.msra.mxu0 0
  %224 = vmatprep.subr.bf16.mxu0 0
  %225 = vmatpush1.bf16.msra.mxu0 0
  %226 = vmatprep.subr.bf16.mxu0 0
  %227 = vmatpush1.bf16.msra.mxu0 0
  %228 = vmatprep.subr.bf16.mxu0 0
  %229 = vmatpush1.bf16.msra.mxu0 0
  %230 = vmatprep.mubr.bf16.mxu0 0
  %231 = vmatmul.mubr.bf16.gmra.mrb[0].mxu0 %v196
  %v232 = vpop.f32.mrb[0].mxu0
  %v233 = vadd.f32 %v181, %v232
  %v234 = vpop.f32.mrb[0].mxu0
  %v235 = vpop.f32.mrb[0].mxu0
  %v236 = vpop.f32.mrb[0].mxu0
  %237 = vdwg.mxu0
  %v238 = vpack.c.bf16 %v233, %v233
  %v239 = vtanh.bf16.pop %v238
  %v240 = vld [vmem:[%s7] sm:$0xf]
  %v241 = vld [vmem:[%s7 + $0x4] sm:$0xf]
  %v242 = vld [vmem:[%s7 + $0x8] sm:$0xf]
  %v243 = vld [vmem:[%s7 + $0xc] sm:$0xf]
  %v244 = vld [vmem:[%s8] sm:$0x1]
  %v246 = vlaneseq
  %v247 = vshrl.u32 %v246, 7
  %v248 = vsub.s32 0, %v247
  %v249 = vrot.slane %v244, %v248
  %v255 = vunpack.c.l.b16 %v240
  %v256 = vunpack.c.l.b16 %v241
  %v257 = vunpack.c.l.b16 %v242
  %v258 = vunpack.c.l.b16 %v243
  %v259 = vpack.c.b16 %v256, %v255
  %v260 = vpack.c.b16 %v258, %v257
  %v264 = vsel %vm58, %v239, 0
  %266 = vmatprep.subr.bf16.mxu0 0
  %267 = vmatpush1.bf16.msra.mxu0 %v259
  %268 = vmatprep.subr.bf16.mxu0 0
  %269 = vmatpush1.bf16.msra.mxu0 %v260
  %270 = vmatprep.subr.bf16.mxu0 0
  %271 = vmatpush1.bf16.msra.mxu0 0
  %272 = vmatprep.subr.bf16.mxu0 0
  %273 = vmatpush1.bf16.msra.mxu0 0
  %274 = vmatprep.subr.bf16.mxu0 0
  %275 = vmatpush1.bf16.msra.mxu0 0
  %276 = vmatprep.subr.bf16.mxu0 0
  %277 = vmatpush1.bf16.msra.mxu0 0
  %278 = vmatprep.subr.bf16.mxu0 0
  %279 = vmatpush1.bf16.msra.mxu0 0
  %280 = vmatprep.subr.bf16.mxu0 0
  %281 = vmatpush1.bf16.msra.mxu0 0
  %282 = vmatprep.subr.bf16.mxu0 0
  %283 = vmatpush1.bf16.msra.mxu0 0
  %284 = vmatprep.subr.bf16.mxu0 0
  %285 = vmatpush1.bf16.msra.mxu0 0
  %286 = vmatprep.subr.bf16.mxu0 0
  %287 = vmatpush1.bf16.msra.mxu0 0
  %288 = vmatprep.subr.bf16.mxu0 0
  %289 = vmatpush1.bf16.msra.mxu0 0
  %290 = vmatprep.subr.bf16.mxu0 0
  %291 = vmatpush1.bf16.msra.mxu0 0
  %292 = vmatprep.subr.bf16.mxu0 0
  %293 = vmatpush1.bf16.msra.mxu0 0
  %294 = vmatprep.subr.bf16.mxu0 0
  %295 = vmatpush1.bf16.msra.mxu0 0
  %296 = vmatprep.subr.bf16.mxu0 0
  %297 = vmatpush1.bf16.msra.mxu0 0
  %298 = vmatprep.mubr.bf16.mxu0 0
  %299 = vmatmul.mubr.bf16.gmra.mrb[0].mxu0 %v264
  %v300 = vpop.f32.mrb[0].mxu0
  %v301 = vadd.f32 %v249, %v300
  %v302 = vpop.f32.mrb[0].mxu0
  %v303 = vpop.f32.mrb[0].mxu0
  %v304 = vpop.f32.mrb[0].mxu0
  %305 = vdwg.mxu0
  %vm306 = vcmask 386048
  %307 = vst.msk [vmem:[%s9] sm:$0x3] %vm306, %v301
  // Predicated region
  $region38: #{bases_forward.1} parent=0 // pred_check
    _
  $region39: #{bases_forward.1} parent=0 // pred_check_branch
    %309 = sbr.rel (0) target = $region41
  $region40: #{bases_forward.1} parent=0 // pred_region
    _
  $region41: #{bases_forward.1} parent=0 // pred_fallthru
    _
  // Predicated region
  $region42: #{bases_forward.1} parent=0 // pred_check
    _
  $region43: #{bases_forward.1} parent=0 // pred_check_branch
    %311 = sbr.rel (0) target = $region45
  $region44: #{bases_forward.1} parent=0 // pred_region
    _
  $region45: #{bases_forward.1} parent=0 // pred_fallthru
    _

</llo_original>
